<compile_context>
chip_gen: v5e
topology: v5e:2x2
jax: 0.10.0
libtpu: 0.0.40
codegen_flags: <defaults>
</compile_context>

<pallas_src>
import functools
import math

import jax
import jax.numpy as jnp
from jax.experimental import pallas as pl
from jax.experimental.pallas import tpu as pltpu

LANE = 128
SUBLANE = 8


def _round_up(n, m):
    return ((n + m - 1) // m) * m


def _mlp_kernel(x_ref, w1_ref, b1_ref, w2_ref, b2_ref, w3_ref, b3_ref, o_ref,
                *, out_dim: int, softmax_output: bool):
    # fc1 + relu  (bf16 matmul inputs, f32 accumulation / elementwise)
    x = x_ref[...].astype(jnp.bfloat16)
    h = jnp.dot(x, w1_ref[...], preferred_element_type=jnp.float32)
    h = jnp.maximum(h + b1_ref[...], 0.0)
    # fc2 + relu
    h = jnp.dot(h.astype(jnp.bfloat16), w2_ref[...],
                preferred_element_type=jnp.float32)
    h = jnp.maximum(h + b2_ref[...], 0.0)
    # fc3
    logits = jnp.dot(h.astype(jnp.bfloat16), w3_ref[...],
                     preferred_element_type=jnp.float32)
    logits = logits + b3_ref[...]
    if softmax_output:
        # Padded lanes carry b3 = -1e30 (W3 pad-cols are zero), so exp -> 0:
        # no explicit lane mask needed and the row sum covers only real lanes.
        m = jnp.max(logits, axis=-1, keepdims=True)
        e = jnp.exp(logits - m)
        denom = jnp.sum(e, axis=-1, keepdims=True)
        result = e / denom   # exact divide: rows must sum to 1 (approx recip drifts ~1e-3)
    else:
        result = logits
    # Store only the real output lanes (o_ref last dim == true out_dim).
    o_ref[...] = result[:, :out_dim].astype(o_ref.dtype)


def neural_net_forward(x, prepared, out_dim: int, softmax_output: bool,
                       *, block_b: int = 1024):
    """x: (B, input_dim) f32. prepared: lane-padded params (see prepare_params)."""
    w1, b1 = prepared["w1"], prepared["b1"]
    w2, b2 = prepared["w2"], prepared["b2"]
    w3, b3 = prepared["w3"], prepared["b3"]

    B, input_dim = x.shape
    hp = w1.shape[1]     # padded hidden dim (multiple of 128)
    op = w3.shape[1]     # padded output dim (multiple of 128)

    # Batch tile: multiple of 8 sublanes, <= block_b rows per grid step, and
    # capped at ~half the batch so the parallel grid has >=2 steps (lets v7x's
    # two TensorCores split the batch; no-op on v5e/v6e).
    b_min = _round_up(B, SUBLANE)
    half = _round_up(-(-b_min // 2), SUBLANE)
    tb = max(SUBLANE, min(block_b, half))
    b_pad = _round_up(B, tb)
    if b_pad != B:
        x = jnp.pad(x, ((0, b_pad - B), (0, 0)))
    grid = (b_pad // tb,)

    kernel = functools.partial(_mlp_kernel, out_dim=out_dim,
                               softmax_output=softmax_output)

    flops = 2 * b_pad * (input_dim * hp + hp * hp + hp * op)
    transcendentals = b_pad * op if softmax_output else 0
    bytes_accessed = (b_pad * input_dim * 4
                      + (w1.size + w2.size + w3.size) * 2
                      + (b1.size + b2.size + b3.size) * 4
                      + b_pad * out_dim * 4)

    resident = lambda i: (0, 0)   # weights/biases stay VMEM-resident across grid
    out = pl.pallas_call(
        kernel,
        out_shape=jax.ShapeDtypeStruct((b_pad, out_dim), jnp.float32),
        grid_spec=pltpu.PrefetchScalarGridSpec(
            num_scalar_prefetch=0,
            grid=grid,
            in_specs=[
                pl.BlockSpec((tb, input_dim), lambda i: (i, 0)),
                pl.BlockSpec(w1.shape, resident),
                pl.BlockSpec(b1.shape, resident),
                pl.BlockSpec(w2.shape, resident),
                pl.BlockSpec(b2.shape, resident),
                pl.BlockSpec(w3.shape, resident),
                pl.BlockSpec(b3.shape, resident),
            ],
            # True-width output block (last dim == full array dim is legal).
            out_specs=pl.BlockSpec((tb, out_dim), lambda i: (i, 0)),
        ),
        compiler_params=pltpu.CompilerParams(
            dimension_semantics=("parallel",),
            vmem_limit_bytes=32 * 1024 * 1024),
        cost_estimate=pl.CostEstimate(
            flops=flops,
            transcendentals=transcendentals,
            bytes_accessed=bytes_accessed),
    )(x, w1, b1, w2, b2, w3, b3)

    # Strip batch padding only (no lane padding in the output anymore).
    return out[:B] if b_pad != B else out


def init_params(key, input_dim, hidden_dim, output_dim):
    """Deterministic init mimicking nn.Linear default U(-1/sqrt(fan_in), 1/sqrt(fan_in))."""
    def linear(k, fan_in, fan_out):
        kw, kb = jax.random.split(k)
        bound = 1.0 / math.sqrt(fan_in)
        w = jax.random.uniform(kw, (fan_in, fan_out), jnp.float32, -bound, bound)
        b = jax.random.uniform(kb, (1, fan_out), jnp.float32, -bound, bound)
        return w, b

    k1, k2, k3 = jax.random.split(key, 3)
    w1, b1 = linear(k1, input_dim, hidden_dim)
    w2, b2 = linear(k2, hidden_dim, hidden_dim)
    w3, b3 = linear(k3, hidden_dim, output_dim)
    return {"w1": w1, "b1": b1, "w2": w2, "b2": b2, "w3": w3, "b3": b3}


def prepare_params(params, compute_dtype=jnp.bfloat16):
    """Zero-pad hidden/output dims to lane (128) multiples; cast weights to bf16.

    Zero padding is mathematically exact: padded hidden features are 0 through
    relu and contribute nothing to the next matmul. b3's padded output lanes
    are filled with -1e30 so the softmax inside the kernel treats them as
    exp -> 0 without any explicit lane mask; non-softmax padded lanes are
    never stored (true-width output).
    """
    w1, b1 = params["w1"], params["b1"]
    w2, b2 = params["w2"], params["b2"]
    w3, b3 = params["w3"], params["b3"]
    input_dim, hidden = w1.shape
    out_dim = w3.shape[1]
    hp = _round_up(hidden, LANE)
    op = _round_up(out_dim, LANE)
    NEG = -1e30

    def pad2(a, rows, cols, fill=0.0):
        return jnp.pad(a, ((0, rows - a.shape[0]), (0, cols - a.shape[1])),
                       constant_values=fill)

    return {
        "w1": pad2(w1, input_dim, hp).astype(compute_dtype),
        "b1": pad2(b1, 1, hp),                      # biases stay f32 (VPU math)
        "w2": pad2(w2, hp, hp).astype(compute_dtype),
        "b2": pad2(b2, 1, hp),
        "w3": pad2(w3, hp, op).astype(compute_dtype),
        "b3": pad2(b3, 1, op, fill=NEG),            # padded logits -> -1e30 -> exp 0
    }


def _reference_forward(x, params, softmax_output):
    h = jnp.maximum(x @ params["w1"] + params["b1"], 0.0)
    h = jnp.maximum(h @ params["w2"] + params["b2"], 0.0)
    logits = h @ params["w3"] + params["b3"]
    return jax.nn.softmax(logits, axis=-1) if softmax_output else logits


if __name__ == "__main__":
    # Small shapes consistent with the module: batch=8, input_dim=16, hidden=32, output=8.
    B, INPUT_DIM, HIDDEN_DIM, OUTPUT_DIM = 8, 16, 32, 8

    key = jax.random.PRNGKey(0)
    kx, kp = jax.random.split(key)
    x = jax.random.normal(kx, (B, INPUT_DIM), dtype=jnp.float32)
    raw_params = init_params(kp, INPUT_DIM, HIDDEN_DIM, OUTPUT_DIM)
    prepared = prepare_params(raw_params)

    # Policy head (softmax_output=True).
    out_sm = neural_net_forward(x, prepared, OUTPUT_DIM, softmax_output=True)
    out_sm = jax.block_until_ready(out_sm)
    ref_sm = _reference_forward(x, raw_params, True)
    assert out_sm.shape == (B, OUTPUT_DIM)
    # bf16 matmul inputs with f32 accumulation -> loosen tolerance vs f32 ref.
    assert jnp.allclose(out_sm, ref_sm, atol=2e-2, rtol=2e-2), "softmax mismatch"
    assert jnp.allclose(jnp.sum(out_sm, axis=-1), 1.0, atol=1e-3), "rows must sum to 1"

    # Value-style head (softmax_output=False).
    out_lg = neural_net_forward(x, prepared, OUTPUT_DIM, softmax_output=False)
    out_lg = jax.block_until_ready(out_lg)
    ref_lg = _reference_forward(x, raw_params, False)
    assert out_lg.shape == (B, OUTPUT_DIM)
    assert jnp.allclose(out_lg, ref_lg, atol=5e-2, rtol=5e-2), "logits mismatch"

    print("KERNEL_OK")
</pallas_src>

<mosaic_0001>
module attributes {stable_mosaic.version = 11 : i64} {
  func.func @_mlp_kernel(%arg0: i32, %arg1: memref<8x16xf32, #tpu.memory_space<vmem>>, %arg2: memref<16x128xbf16, #tpu.memory_space<vmem>>, %arg3: memref<1x128xf32, #tpu.memory_space<vmem>>, %arg4: memref<128x128xbf16, #tpu.memory_space<vmem>>, %arg5: memref<1x128xf32, #tpu.memory_space<vmem>>, %arg6: memref<128x128xbf16, #tpu.memory_space<vmem>>, %arg7: memref<1x128xf32, #tpu.memory_space<vmem>>, %arg8: memref<8x8xf32, #tpu.memory_space<vmem>>) attributes {dimension_semantics = [#tpu.dimension_semantics<parallel>], iteration_bounds = array<i64: 1>, scalar_prefetch = 0 : i64, scratch_operands = 0 : i64, tpu.core_type = #tpu.core_type<tc>, window_params = [{transform_indices = @transform_0, window_bounds = array<i64: 8, 16>}, {pipeline_mode = #tpu.pipeline_mode<synchronous>, transform_indices = @transform_1, window_bounds = array<i64: 16, 128>}, {pipeline_mode = #tpu.pipeline_mode<synchronous>, transform_indices = @transform_2, window_bounds = array<i64: 1, 128>}, {pipeline_mode = #tpu.pipeline_mode<synchronous>, transform_indices = @transform_3, window_bounds = array<i64: 128, 128>}, {pipeline_mode = #tpu.pipeline_mode<synchronous>, transform_indices = @transform_4, window_bounds = array<i64: 1, 128>}, {pipeline_mode = #tpu.pipeline_mode<synchronous>, transform_indices = @transform_5, window_bounds = array<i64: 128, 128>}, {pipeline_mode = #tpu.pipeline_mode<synchronous>, transform_indices = @transform_6, window_bounds = array<i64: 1, 128>}, {transform_indices = @transform_7, window_bounds = array<i64: 8, 8>}]} {
    %c0 = arith.constant 0 : index
    %c0_0 = arith.constant 0 : index
    %0 = vector.load %arg1[%c0, %c0_0] : memref<8x16xf32, #tpu.memory_space<vmem>>, vector<8x16xf32>
    %1 = arith.truncf %0 : vector<8x16xf32> to vector<8x16xbf16>
    %c0_1 = arith.constant 0 : index
    %c0_2 = arith.constant 0 : index
    %2 = vector.load %arg2[%c0_1, %c0_2] : memref<16x128xbf16, #tpu.memory_space<vmem>>, vector<16x128xbf16>
    %cst = arith.constant dense<0.000000e+00> : vector<8x128xf32>
    %3 = tpu.matmul %1, %2, %cst {dimension_numbers = #tpu.dot_dimension_numbers<[1], [0], [0], [1], [0, 0, 1, 1], [], []>} : vector<8x16xbf16>, vector<16x128xbf16>, vector<8x128xf32> -> vector<8x128xf32>
    %c0_3 = arith.constant 0 : index
    %c0_4 = arith.constant 0 : index
    %4 = vector.load %arg3[%c0_3, %c0_4] : memref<1x128xf32, #tpu.memory_space<vmem>>, vector<1x128xf32>
    %5 = vector.broadcast %4 : vector<1x128xf32> to vector<8x128xf32>
    %6 = arith.addf %3, %5 : vector<8x128xf32>
    %cst_5 = arith.constant 0.000000e+00 : f32
    %7 = vector.broadcast %cst_5 : f32 to vector<8x128xf32>
    %8 = arith.maximumf %6, %7 : vector<8x128xf32>
    %9 = arith.truncf %8 : vector<8x128xf32> to vector<8x128xbf16>
    %c0_6 = arith.constant 0 : index
    %c0_7 = arith.constant 0 : index
    %10 = vector.load %arg4[%c0_6, %c0_7] : memref<128x128xbf16, #tpu.memory_space<vmem>>, vector<128x128xbf16>
    %cst_8 = arith.constant dense<0.000000e+00> : vector<8x128xf32>
    %11 = tpu.matmul %9, %10, %cst_8 {dimension_numbers = #tpu.dot_dimension_numbers<[1], [0], [0], [1], [0, 0, 1, 1], [], []>} : vector<8x128xbf16>, vector<128x128xbf16>, vector<8x128xf32> -> vector<8x128xf32>
    %c0_9 = arith.constant 0 : index
    %c0_10 = arith.constant 0 : index
    %12 = vector.load %arg5[%c0_9, %c0_10] : memref<1x128xf32, #tpu.memory_space<vmem>>, vector<1x128xf32>
    %13 = vector.broadcast %12 : vector<1x128xf32> to vector<8x128xf32>
    %14 = arith.addf %11, %13 : vector<8x128xf32>
    %cst_11 = arith.constant 0.000000e+00 : f32
    %15 = vector.broadcast %cst_11 : f32 to vector<8x128xf32>
    %16 = arith.maximumf %14, %15 : vector<8x128xf32>
    %17 = arith.truncf %16 : vector<8x128xf32> to vector<8x128xbf16>
    %c0_12 = arith.constant 0 : index
    %c0_13 = arith.constant 0 : index
    %18 = vector.load %arg6[%c0_12, %c0_13] : memref<128x128xbf16, #tpu.memory_space<vmem>>, vector<128x128xbf16>
    %cst_14 = arith.constant dense<0.000000e+00> : vector<8x128xf32>
    %19 = tpu.matmul %17, %18, %cst_14 {dimension_numbers = #tpu.dot_dimension_numbers<[1], [0], [0], [1], [0, 0, 1, 1], [], []>} : vector<8x128xbf16>, vector<128x128xbf16>, vector<8x128xf32> -> vector<8x128xf32>
    %c0_15 = arith.constant 0 : index
    %c0_16 = arith.constant 0 : index
    %20 = vector.load %arg7[%c0_15, %c0_16] : memref<1x128xf32, #tpu.memory_space<vmem>>, vector<1x128xf32>
    %21 = vector.broadcast %20 : vector<1x128xf32> to vector<8x128xf32>
    %22 = arith.addf %19, %21 : vector<8x128xf32>
    %cst_17 = arith.constant dense<0xFF800000> : vector<8xf32>
    %23 = vector.multi_reduction <maximumf>, %22, %cst_17 [1] : vector<8x128xf32> to vector<8xf32>
    %24 = vector.shape_cast %23 : vector<8xf32> to vector<8x1xf32>
    %25 = vector.broadcast %24 : vector<8x1xf32> to vector<8x128xf32>
    %26 = arith.subf %22, %25 : vector<8x128xf32>
    %27 = math.exp %26 : vector<8x128xf32>
    %cst_18 = arith.constant dense<0.000000e+00> : vector<8xf32>
    %28 = vector.multi_reduction <add>, %27, %cst_18 [1] : vector<8x128xf32> to vector<8xf32>
    %29 = vector.shape_cast %28 : vector<8xf32> to vector<8x1xf32>
    %30 = vector.broadcast %29 : vector<8x1xf32> to vector<8x128xf32>
    %31 = arith.divf %27, %30 : vector<8x128xf32>
    %32 = vector.extract_strided_slice %31 {offsets = [0, 0], sizes = [8, 8], strides = [1, 1]} : vector<8x128xf32> to vector<8x8xf32>
    %c0_19 = arith.constant 0 : index
    %c0_20 = arith.constant 0 : index
    %33 = vector.load %arg8[%c0_19, %c0_20] : memref<8x8xf32, #tpu.memory_space<vmem>>, vector<8x8xf32>
    tpu.vector_store %arg8[%c0_19, %c0_20], %32 {strides = array<i32>} : memref<8x8xf32, #tpu.memory_space<vmem>>, vector<8x8xf32>,
    return
  }
  func.func @transform_0(%arg0: i32) -> (i32, i32) {
    %c0_i32 = arith.constant 0 : i32
    %c0_i32_0 = arith.constant 0 : i32
    return %arg0, %c0_i32 : i32, i32
  }
  func.func @transform_1(%arg0: i32) -> (i32, i32) {
    %c0_i32 = arith.constant 0 : i32
    %c0_i32_0 = arith.constant 0 : i32
    %c0_i32_1 = arith.constant 0 : i32
    return %c0_i32, %c0_i32_0 : i32, i32
  }
  func.func @transform_2(%arg0: i32) -> (i32, i32) {
    %c0_i32 = arith.constant 0 : i32
    %c0_i32_0 = arith.constant 0 : i32
    %c0_i32_1 = arith.constant 0 : i32
    return %c0_i32, %c0_i32_0 : i32, i32
  }
  func.func @transform_3(%arg0: i32) -> (i32, i32) {
    %c0_i32 = arith.constant 0 : i32
    %c0_i32_0 = arith.constant 0 : i32
    %c0_i32_1 = arith.constant 0 : i32
    return %c0_i32, %c0_i32_0 : i32, i32
  }
  func.func @transform_4(%arg0: i32) -> (i32, i32) {
    %c0_i32 = arith.constant 0 : i32
    %c0_i32_0 = arith.constant 0 : i32
    %c0_i32_1 = arith.constant 0 : i32
    return %c0_i32, %c0_i32_0 : i32, i32
  }
  func.func @transform_5(%arg0: i32) -> (i32, i32) {
    %c0_i32 = arith.constant 0 : i32
    %c0_i32_0 = arith.constant 0 : i32
    %c0_i32_1 = arith.constant 0 : i32
    return %c0_i32, %c0_i32_0 : i32, i32
  }
  func.func @transform_6(%arg0: i32) -> (i32, i32) {
    %c0_i32 = arith.constant 0 : i32
    %c0_i32_0 = arith.constant 0 : i32
    %c0_i32_1 = arith.constant 0 : i32
    return %c0_i32, %c0_i32_0 : i32, i32
  }
  func.func @transform_7(%arg0: i32) -> (i32, i32) {
    %c0_i32 = arith.constant 0 : i32
    %c0_i32_0 = arith.constant 0 : i32
    return %arg0, %c0_i32 : i32, i32
  }
}

</mosaic_0001>

<llo_original>
// kernel: tpu_custom_call.1
$region0: #{tpu_custom_call.1}
  #allocation0 [shape = 'u32[]', space=smem, size = 0x4, offset = 0x4, fixed_abs, tag = 'smem constant byte address 0x4 - core index']
  #allocation1 [shape = 'u32[72,128]{1,0:T(1,128)}', space=vmem, size = 0x9000, scoped, tag = 'internal scratch']
  %s0 = inlined_call_operand.hbm [shape: f32[8,16], index: 0, kind: input, shape index: {}]
  %s1 = inlined_call_operand.hbm [shape: bf16[16,128], index: 1, kind: input, shape index: {}]
  %s2 = inlined_call_operand.vmem [shape: f32[1,128], index: 2, kind: input, shape index: {}]
  %s3 = inlined_call_operand.hbm [shape: bf16[128,128], index: 3, kind: input, shape index: {}]
  %s4 = inlined_call_operand.vmem [shape: f32[1,128], index: 4, kind: input, shape index: {}]
  %s5 = inlined_call_operand.hbm [shape: bf16[128,128], index: 5, kind: input, shape index: {}]
  %s6 = inlined_call_operand.vmem [shape: f32[1,128], index: 6, kind: input, shape index: {}]
  %s7 = inlined_call_operand.hbm [shape: f32[8,8], index: 7, kind: output, shape index: {}]
  %s8 = sld [smem:[#allocation0]]
  $region54: #{tpu_custom_call.1} parent=0
    _
  %s10 = ssub.s32 1, %s8
  %s11 = scalar_select 0, %s10, %s8
  $region1: #{tpu_custom_call.1} parent=0
    #allocation2 [shape = 'u8[4096]{0}', space=vmem, size = 0x1000, scoped, tag = 'input window, operand 0, single buffered']
    #allocation3 [shape = 's32[1]{0}', space=sflag, size = 0x4, scoped, tag = 'scoped memory for tpu_custom_call.1']
    #allocation4 [shape = 's32[1]{0}', space=sflag, size = 0x4, scoped, tag = 'scoped memory for tpu_custom_call.1']
    #allocation5 [shape = 'u8[4096]{0}', space=vmem, size = 0x1000, scoped, tag = 'input window, operand 1, single buffered']
    #allocation6 [shape = 's32[1]{0}', space=sflag, size = 0x4, scoped, tag = 'scoped memory for tpu_custom_call.1']
    #allocation7 [shape = 'u8[32768]{0}', space=vmem, size = 0x8000, scoped, tag = 'input window, operand 3, single buffered']
    #allocation8 [shape = 'u8[32768]{0}', space=vmem, size = 0x8000, scoped, tag = 'input window, operand 5, single buffered']
    #allocation9 [shape = 's32[1]{0}', space=sflag, size = 0x4, scoped, tag = 'scoped memory for tpu_custom_call.1']
    #allocation10 [shape = 'u8[4096]{0}', space=vmem, size = 0x1000, scoped, tag = 'output window, operand 0, single buffered']
    %12 = vsyncpa [#allocation3], 0
    %13 = vsyncpa [#allocation6], 0
    %14 = vsyncpa [#allocation9], 0
    %15 = vsyncpa [#allocation4], 0
    // Predicated region
    $region2: #{tpu_custom_call.1} parent=1 // pred_check
      _
    $region3: #{tpu_custom_call.1} parent=1 // pred_check_branch
      %17 = sbr.rel (0) target = $region5
    $region4: #{tpu_custom_call.1} parent=1 // pred_region
      %19 = vsyncadd [#allocation3], 0
      %s21 = sshll.u32 %s0, 4
      %s22 = int_to_ptr.hbm [resolvable:$true] %s21
      %s23 = sshll.u32 [#allocation2], 4
      %s24 = int_to_ptr.vmem [resolvable:$true] %s23
      %26 = dma.hbm_to_vmem [thread:$0]  %s22, 128, %s24, [#allocation3]
    $region5: #{tpu_custom_call.1} parent=1 // pred_fallthru
      _
    // Predicated region
    $region6: #{tpu_custom_call.1} parent=1 // pred_check
      _
    $region7: #{tpu_custom_call.1} parent=1 // pred_check_branch
      %28 = sbr.rel (0) target = $region9
    $region8: #{tpu_custom_call.1} parent=1 // pred_region
      %30 = vsyncadd [#allocation6], 0
      %s31 = sshll.u32 %s1, 4
      %s32 = int_to_ptr.hbm [resolvable:$true] %s31
      %s33 = sshll.u32 [#allocation5], 4
      %s34 = int_to_ptr.vmem [resolvable:$true] %s33
      %39 = dma.hbm_to_vmem [thread:$0]  %s32, 128, %s34, [#allocation6], 64, 64, 4
    $region9: #{tpu_custom_call.1} parent=1 // pred_fallthru
      _
    // Predicated region
    $region10: #{tpu_custom_call.1} parent=1 // pred_check
      _
    $region11: #{tpu_custom_call.1} parent=1 // pred_check_branch
      %41 = sbr.rel (0) target = $region13
    $region12: #{tpu_custom_call.1} parent=1 // pred_region
      _
    $region13: #{tpu_custom_call.1} parent=1 // pred_fallthru
      _
    // Predicated region
    $region14: #{tpu_custom_call.1} parent=1 // pred_check
      _
    $region15: #{tpu_custom_call.1} parent=1 // pred_check_branch
      %43 = sbr.rel (0) target = $region17
    $region16: #{tpu_custom_call.1} parent=1 // pred_region
      %45 = vsyncadd [#allocation6], 0
      %s46 = sshll.u32 %s3, 4
      %s47 = int_to_ptr.hbm [resolvable:$true] %s46
      %s48 = sshll.u32 [#allocation7], 4
      %s49 = int_to_ptr.vmem [resolvable:$true] %s48
      %54 = dma.hbm_to_vmem [thread:$0]  %s47, 1024, %s49, [#allocation6], 64, 64, 4
    $region17: #{tpu_custom_call.1} parent=1 // pred_fallthru
      _
    // Predicated region
    $region18: #{tpu_custom_call.1} parent=1 // pred_check
      _
    $region19: #{tpu_custom_call.1} parent=1 // pred_check_branch
      %56 = sbr.rel (0) target = $region21
    $region20: #{tpu_custom_call.1} parent=1 // pred_region
      _
    $region21: #{tpu_custom_call.1} parent=1 // pred_fallthru
      _
    // Predicated region
    $region22: #{tpu_custom_call.1} parent=1 // pred_check
      _
    $region23: #{tpu_custom_call.1} parent=1 // pred_check_branch
      %58 = sbr.rel (0) target = $region25
    $region24: #{tpu_custom_call.1} parent=1 // pred_region
      %60 = vsyncadd [#allocation9], 0
      %s61 = sshll.u32 %s5, 4
      %s62 = int_to_ptr.hbm [resolvable:$true] %s61
      %s63 = sshll.u32 [#allocation8], 4
      %s64 = int_to_ptr.vmem [resolvable:$true] %s63
      %69 = dma.hbm_to_vmem [thread:$0]  %s62, 1024, %s64, [#allocation9], 64, 64, 4
    $region25: #{tpu_custom_call.1} parent=1 // pred_fallthru
      _
    // Predicated region
    $region26: #{tpu_custom_call.1} parent=1 // pred_check
      _
    $region27: #{tpu_custom_call.1} parent=1 // pred_check_branch
      %71 = sbr.rel (0) target = $region29
    $region28: #{tpu_custom_call.1} parent=1 // pred_region
      _
    $region29: #{tpu_custom_call.1} parent=1 // pred_fallthru
      _
    // Predicated region
    $region30: #{tpu_custom_call.1} parent=1 // pred_check
      _
    $region31: #{tpu_custom_call.1} parent=1 // pred_check_branch
      %73 = sbr.rel (0) target = $region33
    $region32: #{tpu_custom_call.1} parent=1 // pred_region
      %75 = dma.done [#allocation3], 128
    $region33: #{tpu_custom_call.1} parent=1 // pred_fallthru
      _
    // Predicated region
    $region34: #{tpu_custom_call.1} parent=1 // pred_check
      _
    $region35: #{tpu_custom_call.1} parent=1 // pred_check_branch
      %77 = sbr.rel (0) target = $region37
    $region36: #{tpu_custom_call.1} parent=1 // pred_region
      %79 = dma.done [#allocation6], 128
    $region37: #{tpu_custom_call.1} parent=1 // pred_fallthru
      _
    // Predicated region
    $region38: #{tpu_custom_call.1} parent=1 // pred_check
      _
    $region39: #{tpu_custom_call.1} parent=1 // pred_check_branch
      %81 = sbr.rel (0) target = $region41
    $region40: #{tpu_custom_call.1} parent=1 // pred_region
      %83 = dma.done [#allocation6], 1024
    $region41: #{tpu_custom_call.1} parent=1 // pred_fallthru
      _
    // Predicated region
    $region42: #{tpu_custom_call.1} parent=1 // pred_check
      _
    $region43: #{tpu_custom_call.1} parent=1 // pred_check_branch
      %85 = sbr.rel (0) target = $region45
    $region44: #{tpu_custom_call.1} parent=1 // pred_region
      %87 = dma.done [#allocation9], 1024
    $region45: #{tpu_custom_call.1} parent=1 // pred_fallthru
      _
    %v89 = vld [vmem:[#allocation2] sm:$0xff]
    %v90 = vpack.c.bf16 %v89, %v89
    %v91 = vld [vmem:[#allocation5] sm:$0xf]
    %v92 = vld [vmem:[#allocation5 + $0x4] sm:$0xf]
    %v93 = vld [vmem:[%s2] sm:$0x1]
    %v95 = vperm.slane %v93, 0
    %v99 = vunpack.c.l.b16 %v91
    %v100 = vunpack.c.l.b16 %v92
    %v101 = vpack.c.b16 %v100, %v99
    %vm103 = vcmask 130048
    %v105 = vsel %vm103, %v90, 0
    %107 = vmatpush.bf16.msra.mxu0 0
    %108 = vmatpush.bf16.msra.mxu0 0
    %109 = vmatpush.bf16.msra.mxu0 0
    %110 = vmatpush.bf16.msra.mxu0 0
    %111 = vmatpush.bf16.msra.mxu0 0
    %112 = vmatpush.bf16.msra.mxu0 0
    %113 = vmatpush.bf16.msra.mxu0 0
    %114 = vmatpush.bf16.msra.mxu0 %v101
    %115 = vmatmul.bf16.gmra.mxu0 %v105
    %v116 = vpop.f32.mrf.mxu0
    %v117 = vadd.f32 %v95, %v116
    %v118 = vpop.f32.mrf.mxu0
    %119 = vdwg.mxu0
    %v120 = vmax.f32 %v117, 0.0
    %v121 = vpack.c.bf16 %v120, %v120
    %v122 = vld [vmem:[#allocation7] sm:$0xf]
    %v123 = vld [vmem:[#allocation7 + $0x4] sm:$0xf]
    %v124 = vld [vmem:[#allocation7 + $0x8] sm:$0xf]
    %v125 = vld [vmem:[#allocation7 + $0xc] sm:$0xf]
    %v126 = vld [vmem:[#allocation7 + $0x10] sm:$0xf]
    %v127 = vld [vmem:[#allocation7 + $0x14] sm:$0xf]
    %v128 = vld [vmem:[#allocation7 + $0x18] sm:$0xf]
    %v129 = vld [vmem:[#allocation7 + $0x1c] sm:$0xf]
    %v130 = vld [vmem:[#allocation7 + $0x20] sm:$0xf]
    %v131 = vld [vmem:[#allocation7 + $0x24] sm:$0xf]
    %v132 = vld [vmem:[#allocation7 + $0x28] sm:$0xf]
    %v133 = vld [vmem:[#allocation7 + $0x2c] sm:$0xf]
    %v134 = vld [vmem:[#allocation7 + $0x30] sm:$0xf]
    %v135 = vld [vmem:[#allocation7 + $0x34] sm:$0xf]
    %v136 = vld [vmem:[#allocation7 + $0x38] sm:$0xf]
    %v137 = vld [vmem:[#allocation7 + $0x3c] sm:$0xf]
    %v138 = vld [vmem:[%s4] sm:$0x1]
    %v140 = vperm.slane %v138, 0
    %v158 = vunpack.c.l.b16 %v122
    %v159 = vunpack.c.l.b16 %v123
    %v160 = vunpack.c.l.b16 %v124
    %v161 = vunpack.c.l.b16 %v125
    %v162 = vunpack.c.l.b16 %v126
    %v163 = vunpack.c.l.b16 %v127
    %v164 = vunpack.c.l.b16 %v128
    %v165 = vunpack.c.l.b16 %v129
    %v166 = vunpack.c.l.b16 %v130
    %v167 = vunpack.c.l.b16 %v131
    %v168 = vunpack.c.l.b16 %v132
    %v169 = vunpack.c.l.b16 %v133
    %v170 = vunpack.c.l.b16 %v134
    %v171 = vunpack.c.l.b16 %v135
    %v172 = vunpack.c.l.b16 %v136
    %v173 = vunpack.c.l.b16 %v137
    %v174 = vpack.c.b16 %v159, %v158
    %v175 = vpack.c.b16 %v161, %v160
    %v176 = vpack.c.b16 %v163, %v162
    %v177 = vpack.c.b16 %v165, %v164
    %v178 = vpack.c.b16 %v167, %v166
    %v179 = vpack.c.b16 %v169, %v168
    %v180 = vpack.c.b16 %v171, %v170
    %v181 = vpack.c.b16 %v173, %v172
    %190 = vmatpush.bf16.msra.mxu0 %v181
    %191 = vmatpush.bf16.msra.mxu0 %v180
    %192 = vmatpush.bf16.msra.mxu0 %v179
    %193 = vmatpush.bf16.msra.mxu0 %v178
    %194 = vmatpush.bf16.msra.mxu0 %v177
    %195 = vmatpush.bf16.msra.mxu0 %v176
    %196 = vmatpush.bf16.msra.mxu0 %v175
    %197 = vmatpush.bf16.msra.mxu0 %v174
    %198 = vmatmul.bf16.gmra.mxu0 %v121
    %v199 = vpop.f32.mrf.mxu0
    %v200 = vadd.f32 %v140, %v199
    %v201 = vpop.f32.mrf.mxu0
    %202 = vdwg.mxu0
    %v203 = vmax.f32 %v200, 0.0
    %v204 = vpack.c.bf16 %v203, %v203
    %v205 = vld [vmem:[#allocation8] sm:$0xf]
    %v206 = vld [vmem:[#allocation8 + $0x4] sm:$0xf]
    %v207 = vld [vmem:[#allocation8 + $0x8] sm:$0xf]
    %v208 = vld [vmem:[#allocation8 + $0xc] sm:$0xf]
    %v209 = vld [vmem:[#allocation8 + $0x10] sm:$0xf]
    %v210 = vld [vmem:[#allocation8 + $0x14] sm:$0xf]
    %v211 = vld [vmem:[#allocation8 + $0x18] sm:$0xf]
    %v212 = vld [vmem:[#allocation8 + $0x1c] sm:$0xf]
    %v213 = vld [vmem:[#allocation8 + $0x20] sm:$0xf]
    %v214 = vld [vmem:[#allocation8 + $0x24] sm:$0xf]
    %v215 = vld [vmem:[#allocation8 + $0x28] sm:$0xf]
    %v216 = vld [vmem:[#allocation8 + $0x2c] sm:$0xf]
    %v217 = vld [vmem:[#allocation8 + $0x30] sm:$0xf]
    %v218 = vld [vmem:[#allocation8 + $0x34] sm:$0xf]
    %v219 = vld [vmem:[#allocation8 + $0x38] sm:$0xf]
    %v220 = vld [vmem:[#allocation8 + $0x3c] sm:$0xf]
    %v221 = vld [vmem:[%s6] sm:$0x1]
    %v223 = vperm.slane %v221, 0
    %v241 = vunpack.c.l.b16 %v205
    %v242 = vunpack.c.l.b16 %v206
    %v243 = vunpack.c.l.b16 %v207
    %v244 = vunpack.c.l.b16 %v208
    %v245 = vunpack.c.l.b16 %v209
    %v246 = vunpack.c.l.b16 %v210
    %v247 = vunpack.c.l.b16 %v211
    %v248 = vunpack.c.l.b16 %v212
    %v249 = vunpack.c.l.b16 %v213
    %v250 = vunpack.c.l.b16 %v214
    %v251 = vunpack.c.l.b16 %v215
    %v252 = vunpack.c.l.b16 %v216
    %v253 = vunpack.c.l.b16 %v217
    %v254 = vunpack.c.l.b16 %v218
    %v255 = vunpack.c.l.b16 %v219
    %v256 = vunpack.c.l.b16 %v220
    %v257 = vpack.c.b16 %v242, %v241
    %v258 = vpack.c.b16 %v244, %v243
    %v259 = vpack.c.b16 %v246, %v245
    %v260 = vpack.c.b16 %v248, %v247
    %v261 = vpack.c.b16 %v250, %v249
    %v262 = vpack.c.b16 %v252, %v251
    %v263 = vpack.c.b16 %v254, %v253
    %v264 = vpack.c.b16 %v256, %v255
    %273 = vmatpush.bf16.msra.mxu0 %v264
    %274 = vmatpush.bf16.msra.mxu0 %v263
    %275 = vmatpush.bf16.msra.mxu0 %v262
    %276 = vmatpush.bf16.msra.mxu0 %v261
    %277 = vmatpush.bf16.msra.mxu0 %v260
    %278 = vmatpush.bf16.msra.mxu0 %v259
    %279 = vmatpush.bf16.msra.mxu0 %v258
    %280 = vmatpush.bf16.msra.mxu0 %v257
    %281 = vmatmul.bf16.gmra.mxu0 %v204
    %v282 = vpop.f32.mrf.mxu0
    %v283 = vadd.f32 %v223, %v282
    %v284 = vpop.f32.mrf.mxu0
    %285 = vdwg.mxu0
    %286 = vmax.xlane.f32.xlu0 %v283
    %v287 = vpop.xlane.xlu0 %286
    %v288 = vsub.f32 %v283, %v287
    %v289 = vmul.f32 %v288, 1.442695
    %v290 = vpow.pop %v289
    %291 = vadd.xlane.f32.xlu0 %v290
    %v292 = vpop.xlane.xlu0 %291
    %v293 = vrcp.pop %v292
    %v294 = vmul.f32 %v292, %v293
    %v295 = vsub.f32 1.0, %v294
    %v296 = vmul.f32 %v293, %v295
    %v297 = vadd.f32 %v293, %v296
    %vm298 = vweird.f32 %v292
    %vm299 = vweird.f32 %v293
    %vm300 = vmor %vm298, %vm299
    %v301 = vsel %vm300, %v293, %v297
    %v302 = vand.u32 2147483647, %v292
    %vm303 = vcmp.eq.f32.partialorder %v302, 8.507059e+37
    %v304 = vand.u32 %v292, 2147483648
    %v305 = vor.u32 1.1754944e-38, %v304
    %v306 = vsel %vm303, %v305, %v301
    %v307 = vmul.f32 %v290, %v306
    %vm308 = vcmask 64512
    %309 = vst.msk [vmem:[#allocation10] sm:$0xff] %vm308, %v307
    // Predicated region
    $region46: #{tpu_custom_call.1} parent=1 // pred_check
      _
    $region47: #{tpu_custom_call.1} parent=1 // pred_check_branch
      %311 = sbr.rel (0) target = $region49
    $region48: #{tpu_custom_call.1} parent=1 // pred_region
      %313 = vsyncadd [#allocation4], 0
      %s315 = sshll.u32 [#allocation10], 4
      %s316 = int_to_ptr.vmem [resolvable:$true] %s315
      %s317 = sshll.u32 %s7, 4
      %s318 = int_to_ptr.hbm [resolvable:$true] %s317
      %320 = dma.vmem_to_hbm [thread:$0]  %s316, 128, %s318, [#allocation4]
    $region49: #{tpu_custom_call.1} parent=1 // pred_fallthru
      _
    // Predicated region
    $region50: #{tpu_custom_call.1} parent=1 // pred_check
      _
    $region51: #{tpu_custom_call.1} parent=1 // pred_check_branch
      %322 = sbr.rel (0) target = $region53
    $region52: #{tpu_custom_call.1} parent=1 // pred_region
      %324 = dma.done [#allocation4], 128
    $region53: #{tpu_custom_call.1} parent=1 // pred_fallthru
      _
    %325 = vsyncpa [#allocation3], 1
    %326 = vsyncpa [#allocation6], 1
    %327 = vsyncpa [#allocation9], 1
    %328 = vsyncpa [#allocation4], 1

</llo_original>
